<compile_context>
chip_gen: v6e
topology: v6e:2x2x1
jax: 0.10.0
libtpu: 0.0.40
codegen_flags: <defaults>
</compile_context>

<pallas_src>
import jax
import jax.numpy as jnp
from jax import lax
from jax.experimental import pallas as pl
from jax.experimental.pallas import tpu as pltpu

# Inner-module hyperparameters (implied by the forward / example input).
C_IN = 4
C_OUT = 8
KH = KW = 3
PAD = 1


def _conv_kernel(x_ref, w_ref, b_ref, o_ref, xs_ref):
    # x_ref : (N, H,  W*C_IN)            flattened NHWC input, lane = w*C_IN + ci
    # w_ref : (KH*W*C_IN, W*C_OUT)       banded, pre-packed weights (W-pad folded in)
    # b_ref : (1, W*C_OUT)               bias tiled across W
    # o_ref : (N, H,  W*C_OUT)           lane-dense output, lane = w*C_OUT + co
    # xs_ref: (N, H,  KH*W*C_IN)         VMEM staging: the KH H-shifted taps laid
    #                                    side by side on the lane axis.
    N, H, WC_out = o_ref.shape
    WC_in = x_ref.shape[-1]

    # Build the staging buffer once (one relayout instead of one per tap).
    # Only the PAD pad-rows of each shifted block are zeroed explicitly; every
    # other element is overwritten by the copies below (no full-buffer zero).
    # kh = PAD (center tap): aligned copy.
    xs_ref[:, :, PAD * WC_in:(PAD + 1) * WC_in] = x_ref[...]
    # kh = 0: rows shifted down by PAD; top PAD rows are zero padding.
    xs_ref[:, :PAD, 0:WC_in] = jnp.zeros((N, PAD, WC_in), x_ref.dtype)
    xs_ref[:, PAD:, 0:WC_in] = x_ref[:, :H - PAD, :]
    # kh = KH-1: rows shifted up by PAD; bottom PAD rows are zero padding.
    xs_ref[:, H - PAD:, (KH - 1) * WC_in:] = jnp.zeros((N, PAD, WC_in), x_ref.dtype)
    xs_ref[:, :H - PAD, (KH - 1) * WC_in:] = x_ref[:, PAD:, :]

    # Single fused MXU dot (K = KH*W*C_IN), bias folded into the accumulation.
    a = xs_ref[...].reshape(N * H, KH * WC_in)
    acc = jnp.dot(a, w_ref[...], preferred_element_type=jnp.float32) + b_ref[...]
    o_ref[...] = acc.reshape(N, H, WC_out).astype(o_ref.dtype)


def pack_params(weight, bias, W):
    """One-time parameter repack (call at module init, reuse across forwards).

    Folds kw, C_IN and the zero padding along W into a banded matrix:
      B[kh*W*C_IN + jw*C_IN + ci, j*C_OUT + co] = weight[kh, kw, ci, co]
    with kw = jw - j + PAD when 0 <= kw < KW, else 0 (this also realizes the
    W-direction zero padding, so the kernel never pads lanes).
    """
    kw_idx = jnp.arange(KW)[:, None, None]
    jw_idx = jnp.arange(W)[None, :, None]
    j_idx = jnp.arange(W)[None, None, :]
    sel = (jw_idx == j_idx + kw_idx - PAD).astype(weight.dtype)     # (KW, W, W)
    packed = jnp.einsum("hwio,wxy->hxiyo", weight, sel)             # (KH, W, C_IN, W, C_OUT)
    w_packed = packed.reshape(KH * W * C_IN, W * C_OUT)
    b_tiled = jnp.tile(bias, W).reshape(1, W * C_OUT)
    return w_packed, b_tiled


def conv2d_pallas(x_flat, w_packed, b_tiled):
    """x_flat: (N, H, W*C_IN) f32.  Returns (N, H, W*C_OUT)."""
    N, H, WC_in = x_flat.shape
    WC_out = w_packed.shape[-1]

    return pl.pallas_call(
        _conv_kernel,
        out_shape=jax.ShapeDtypeStruct((N, H, WC_out), x_flat.dtype),
        in_specs=[
            pl.BlockSpec((N, H, WC_in), lambda: (0, 0, 0)),
            pl.BlockSpec(w_packed.shape, lambda: (0, 0)),
            pl.BlockSpec(b_tiled.shape, lambda: (0, 0)),
        ],
        out_specs=pl.BlockSpec((N, H, WC_out), lambda: (0, 0, 0)),
        scratch_shapes=[pltpu.VMEM((N, H, KH * WC_in), jnp.float32)],
    )(x_flat, w_packed, b_tiled)


@jax.jit
def partial_forward(x_nchw, mask, w_packed, b_tiled):
    """Pallas equivalent of Partial(Conv2d).forward(x, mask) -> (y, mask)."""
    N, _, H, W = x_nchw.shape
    # NCHW -> NHWC -> (N, H, W*C_IN): channels interleaved on the lane axis.
    x_flat = jnp.transpose(x_nchw, (0, 2, 3, 1)).reshape(N, H, W * C_IN)
    y_flat = conv2d_pallas(x_flat, w_packed, b_tiled)   # (N, H, W*C_OUT)
    y_nchw = jnp.transpose(y_flat.reshape(N, H, W, C_OUT), (0, 3, 1, 2))
    return y_nchw, mask                                 # mask passes through


if __name__ == "__main__":
    key = jax.random.PRNGKey(0)
    kx, km, kw, kb = jax.random.split(key, 4)

    # Deterministic example inputs (NCHW, like the PyTorch module).
    N, H, W = 2, 16, 16
    x = jax.random.normal(kx, (N, C_IN, H, W), dtype=jnp.float32)
    mask = (jax.random.uniform(km, (N, 1, H, W)) > 0.5).astype(jnp.float32)

    # Deterministic parameter init for the wrapped Conv2d(4, 8, 3, padding=1).
    # weight layout: (KH, KW, C_IN, C_OUT)  (HWIO)
    weight = 0.05 * jax.random.normal(kw, (KH, KW, C_IN, C_OUT), jnp.float32)
    bias = 0.01 * jax.random.normal(kb, (C_OUT,), jnp.float32)

    # One-time repack (module init), reused on every forward call.
    w_packed, b_tiled = pack_params(weight, bias, W)
    w_packed = jax.block_until_ready(w_packed)

    y, mask_out = partial_forward(x, mask, w_packed, b_tiled)
    y = jax.block_until_ready(y)
    mask_out = jax.block_until_ready(mask_out)

    # Sanity check against XLA's conv (NHWC / HWIO).
    x_nhwc = jnp.transpose(x, (0, 2, 3, 1))
    y_ref = lax.conv_general_dilated(
        x_nhwc, weight, window_strides=(1, 1),
        padding=((PAD, PAD), (PAD, PAD)),
        dimension_numbers=("NHWC", "HWIO", "NHWC")) + bias
    y_ref = jnp.transpose(y_ref, (0, 3, 1, 2))
    assert y.shape == (N, C_OUT, H, W)
    assert jnp.allclose(y, y_ref, atol=1e-4, rtol=1e-4)
    assert jnp.array_equal(mask_out, mask)

    print("KERNEL_OK")
</pallas_src>

<mosaic_0001>
module attributes {stable_mosaic.version = 11 : i64} {
  func.func @_conv_kernel(%arg0: memref<2x16x64xf32, #tpu.memory_space<vmem>>, %arg1: memref<192x128xf32, #tpu.memory_space<vmem>>, %arg2: memref<1x128xf32, #tpu.memory_space<vmem>>, %arg3: memref<2x16x128xf32, #tpu.memory_space<vmem>>, %arg4: memref<2x16x192xf32, #tpu.memory_space<vmem>>) attributes {dimension_semantics = [], scalar_prefetch = 0 : i64, scratch_operands = 1 : i64, tpu.core_type = #tpu.core_type<tc>} {
    %c0 = arith.constant 0 : index
    %c0_0 = arith.constant 0 : index
    %c0_1 = arith.constant 0 : index
    %0 = vector.load %arg0[%c0, %c0_0, %c0_1] : memref<2x16x64xf32, #tpu.memory_space<vmem>>, vector<2x16x64xf32>
    %c0_2 = arith.constant 0 : index
    %c0_3 = arith.constant 0 : index
    %c64 = arith.constant 64 : index
    %1 = vector.load %arg4[%c0_2, %c0_3, %c64] : memref<2x16x192xf32, #tpu.memory_space<vmem>>, vector<2x16x64xf32>
    tpu.vector_store %arg4[%c0_2, %c0_3, %c64], %0 {strides = array<i32>} : memref<2x16x192xf32, #tpu.memory_space<vmem>>, vector<2x16x64xf32>,
    %cst = arith.constant 0.000000e+00 : f32
    %2 = vector.broadcast %cst : f32 to vector<2x1x64xf32>
    %c0_4 = arith.constant 0 : index
    %c0_5 = arith.constant 0 : index
    %c0_6 = arith.constant 0 : index
    %3 = vector.load %arg4[%c0_4, %c0_5, %c0_6] : memref<2x16x192xf32, #tpu.memory_space<vmem>>, vector<2x1x64xf32>
    tpu.vector_store %arg4[%c0_4, %c0_5, %c0_6], %2 {strides = array<i32>} : memref<2x16x192xf32, #tpu.memory_space<vmem>>, vector<2x1x64xf32>,
    %c0_7 = arith.constant 0 : index
    %c0_8 = arith.constant 0 : index
    %c0_9 = arith.constant 0 : index
    %4 = vector.load %arg0[%c0_7, %c0_8, %c0_9] : memref<2x16x64xf32, #tpu.memory_space<vmem>>, vector<2x15x64xf32>
    %c0_10 = arith.constant 0 : index
    %c1 = arith.constant 1 : index
    %c0_11 = arith.constant 0 : index
    %5 = vector.load %arg4[%c0_10, %c1, %c0_11] : memref<2x16x192xf32, #tpu.memory_space<vmem>>, vector<2x15x64xf32>
    tpu.vector_store %arg4[%c0_10, %c1, %c0_11], %4 {strides = array<i32>} : memref<2x16x192xf32, #tpu.memory_space<vmem>>, vector<2x15x64xf32>,
    %cst_12 = arith.constant 0.000000e+00 : f32
    %6 = vector.broadcast %cst_12 : f32 to vector<2x1x64xf32>
    %c0_13 = arith.constant 0 : index
    %c15 = arith.constant 15 : index
    %c128 = arith.constant 128 : index
    %7 = vector.load %arg4[%c0_13, %c15, %c128] : memref<2x16x192xf32, #tpu.memory_space<vmem>>, vector<2x1x64xf32>
    tpu.vector_store %arg4[%c0_13, %c15, %c128], %6 {strides = array<i32>} : memref<2x16x192xf32, #tpu.memory_space<vmem>>, vector<2x1x64xf32>,
    %c0_14 = arith.constant 0 : index
    %c1_15 = arith.constant 1 : index
    %c0_16 = arith.constant 0 : index
    %8 = vector.load %arg0[%c0_14, %c1_15, %c0_16] : memref<2x16x64xf32, #tpu.memory_space<vmem>>, vector<2x15x64xf32>
    %c0_17 = arith.constant 0 : index
    %c0_18 = arith.constant 0 : index
    %c128_19 = arith.constant 128 : index
    %9 = vector.load %arg4[%c0_17, %c0_18, %c128_19] : memref<2x16x192xf32, #tpu.memory_space<vmem>>, vector<2x15x64xf32>
    tpu.vector_store %arg4[%c0_17, %c0_18, %c128_19], %8 {strides = array<i32>} : memref<2x16x192xf32, #tpu.memory_space<vmem>>, vector<2x15x64xf32>,
    %c0_20 = arith.constant 0 : index
    %c0_21 = arith.constant 0 : index
    %c0_22 = arith.constant 0 : index
    %10 = vector.load %arg4[%c0_20, %c0_21, %c0_22] : memref<2x16x192xf32, #tpu.memory_space<vmem>>, vector<2x16x192xf32>
    %11 = vector.shape_cast %10 : vector<2x16x192xf32> to vector<32x192xf32>
    %c0_23 = arith.constant 0 : index
    %c0_24 = arith.constant 0 : index
    %12 = vector.load %arg1[%c0_23, %c0_24] : memref<192x128xf32, #tpu.memory_space<vmem>>, vector<192x128xf32>
    %cst_25 = arith.constant dense<0.000000e+00> : vector<32x128xf32>
    %13 = tpu.matmul %11, %12, %cst_25 {dimension_numbers = #tpu.dot_dimension_numbers<[1], [0], [0], [1], [0, 0, 1, 1], [], []>} : vector<32x192xf32>, vector<192x128xf32>, vector<32x128xf32> -> vector<32x128xf32>
    %c0_26 = arith.constant 0 : index
    %c0_27 = arith.constant 0 : index
    %14 = vector.load %arg2[%c0_26, %c0_27] : memref<1x128xf32, #tpu.memory_space<vmem>>, vector<1x128xf32>
    %15 = vector.broadcast %14 : vector<1x128xf32> to vector<32x128xf32>
    %16 = arith.addf %13, %15 : vector<32x128xf32>
    %17 = vector.shape_cast %16 : vector<32x128xf32> to vector<2x16x128xf32>
    %c0_28 = arith.constant 0 : index
    %c0_29 = arith.constant 0 : index
    %c0_30 = arith.constant 0 : index
    %18 = vector.load %arg3[%c0_28, %c0_29, %c0_30] : memref<2x16x128xf32, #tpu.memory_space<vmem>>, vector<2x16x128xf32>
    tpu.vector_store %arg3[%c0_28, %c0_29, %c0_30], %17 {strides = array<i32>} : memref<2x16x128xf32, #tpu.memory_space<vmem>>, vector<2x16x128xf32>,
    return
  }
}

</mosaic_0001>

<llo_original>
// kernel: partial_forward.1
$region0: #{partial_forward.1}
  #allocation0 [shape = 'u32[]', space=smem, size = 0x4, offset = 0x4, fixed_abs, tag = 'smem constant byte address 0x4 - core index']
  #allocation1 [shape = 'u32[144,128]{1,0:T(1,128)}', space=vmem, size = 0x12000, scoped, tag = 'internal scratch']
  #allocation2 [shape = 'f32[2,16,192]{2,1,0:T(8,128)}', space=vmem, size = 0x8000, scoped, tag = 'scratch operand']
  %s0 = inlined_call_operand.vmem [shape: f32[2,16,64], index: 0, kind: input, shape index: {}]
  %s1 = inlined_call_operand.vmem [shape: f32[192,128], index: 1, kind: input, shape index: {}]
  %s2 = inlined_call_operand.vmem [shape: f32[1,128], index: 2, kind: input, shape index: {}]
  %s3 = inlined_call_operand.vmem [shape: f32[2,16,128], index: 3, kind: output, shape index: {}]
  %s4 = sld [smem:[#allocation0]]
  $region22: #{partial_forward.1} parent=0
    _
  %s6 = ssub.s32 1, %s4
  %s7 = scalar_select 0, %s6, %s4
  // Predicated region
  $region2: #{partial_forward.1} parent=0 // pred_check
    _
  $region3: #{partial_forward.1} parent=0 // pred_check_branch
    %9 = sbr.rel (0) target = $region5
  $region4: #{partial_forward.1} parent=0 // pred_region
    _
  $region5: #{partial_forward.1} parent=0 // pred_fallthru
    _
  // Predicated region
  $region6: #{partial_forward.1} parent=0 // pred_check
    _
  $region7: #{partial_forward.1} parent=0 // pred_check_branch
    %11 = sbr.rel (0) target = $region9
  $region8: #{partial_forward.1} parent=0 // pred_region
    _
  $region9: #{partial_forward.1} parent=0 // pred_fallthru
    _
  // Predicated region
  $region10: #{partial_forward.1} parent=0 // pred_check
    _
  $region11: #{partial_forward.1} parent=0 // pred_check_branch
    %13 = sbr.rel (0) target = $region13
  $region12: #{partial_forward.1} parent=0 // pred_region
    _
  $region13: #{partial_forward.1} parent=0 // pred_fallthru
    _
  %v14 = vld [vmem:[%s0] sm:$0xff]
  %v15 = vld [vmem:[%s0 + $0x8] sm:$0xff]
  %v16 = vld [vmem:[%s0 + $0x10] sm:$0xff]
  %v17 = vld [vmem:[%s0 + $0x18] sm:$0xff]
  %22 = vrot.lane.b32.xlu0 %v14, 64
  %v23 = vpop.permute.xlu0 %22
  %24 = vrot.lane.b32.xlu0 %v15, 64
  %v25 = vpop.permute.xlu0 %24
  %26 = vrot.lane.b32.xlu0 %v16, 64
  %v27 = vpop.permute.xlu0 %26
  %28 = vrot.lane.b32.xlu0 %v17, 64
  %v29 = vpop.permute.xlu0 %28
  %vm34 = vcmask 1048064
  %35 = vst.msk [vmem:[#allocation2] sm:$0xff] %vm34, %v23
  %36 = vst.msk [vmem:[#allocation2 + $0x10] sm:$0xff] %vm34, %v25
  %37 = vst.msk [vmem:[#allocation2 + $0x20] sm:$0xff] %vm34, %v27
  %38 = vst.msk [vmem:[#allocation2 + $0x30] sm:$0xff] %vm34, %v29
  %vm39 = vcmask 516096
  %40 = vst.msk [vmem:[#allocation2] sm:$0x1] %vm39, 0.0
  %41 = vst.msk [vmem:[#allocation2 + $0x20] sm:$0x1] %vm39, 0.0
  %v42 = vld [vmem:[%s0] sm:$0xff]
  %v43 = vld [vmem:[%s0 + $0x8] sm:$0x7f]
  %v44 = vld [vmem:[%s0 + $0x10] sm:$0xff]
  %v45 = vld [vmem:[%s0 + $0x18] sm:$0x7f]
  %vm50 = vcmask 1040384
  %v51 = vrot.slane %v42, 7
  %v52 = vrot.slane %v43, 7
  %v53 = vsel %vm50, %v51, %v52
  %v54 = vrot.slane %v44, 7
  %v55 = vrot.slane %v45, 7
  %v56 = vsel %vm50, %v54, %v55
  %vm61 = vcmask 523265
  %62 = vst.msk [vmem:[#allocation2] sm:$0xfe] %vm61, %v51
  %vm63 = vcmask 523264
  %64 = vst.msk [vmem:[#allocation2 + $0x10] sm:$0xff] %vm63, %v53
  %65 = vst.msk [vmem:[#allocation2 + $0x20] sm:$0xfe] %vm61, %v54
  %66 = vst.msk [vmem:[#allocation2 + $0x30] sm:$0xff] %vm63, %v56
  %67 = vst.msk [vmem:[#allocation2 + $0x1f] sm:$0x1] %vm39, 0.0
  %68 = vst.msk [vmem:[#allocation2 + $0x3f] sm:$0x1] %vm39, 0.0
  %v69 = vld [vmem:[%s0 + $0x1] sm:$0xff]
  %v70 = vld [vmem:[%s0 + $0x9] sm:$0x7f]
  %v71 = vld [vmem:[%s0 + $0x11] sm:$0xff]
  %v72 = vld [vmem:[%s0 + $0x19] sm:$0x7f]
  %73 = vst.msk [vmem:[#allocation2 + $0x8] sm:$0xff] %vm63, %v69
  %vm74 = vcmask 522240
  %75 = vst.msk [vmem:[#allocation2 + $0x18] sm:$0x7f] %vm74, %v70
  %76 = vst.msk [vmem:[#allocation2 + $0x28] sm:$0xff] %vm63, %v71
  %77 = vst.msk [vmem:[#allocation2 + $0x38] sm:$0x7f] %vm74, %v72
  %v78 = vld [vmem:[#allocation2] sm:$0xff]
  %v79 = vld [vmem:[#allocation2 + $0x8] sm:$0xff]
  %v80 = vld [vmem:[#allocation2 + $0x10] sm:$0xff]
  %v81 = vld [vmem:[#allocation2 + $0x18] sm:$0xff]
  %v82 = vld [vmem:[#allocation2 + $0x20] sm:$0xff]
  %v83 = vld [vmem:[#allocation2 + $0x28] sm:$0xff]
  %v84 = vld [vmem:[#allocation2 + $0x30] sm:$0xff]
  %v85 = vld [vmem:[#allocation2 + $0x38] sm:$0xff]
  %v86 = vld [vmem:[%s1] sm:$0xff]
  %v87 = vld [vmem:[%s1 + $0x8] sm:$0xff]
  %v88 = vld [vmem:[%s1 + $0x10] sm:$0xff]
  %v89 = vld [vmem:[%s1 + $0x18] sm:$0xff]
  %v90 = vld [vmem:[%s1 + $0x20] sm:$0xff]
  %v91 = vld [vmem:[%s1 + $0x28] sm:$0xff]
  %v92 = vld [vmem:[%s1 + $0x30] sm:$0xff]
  %v93 = vld [vmem:[%s1 + $0x38] sm:$0xff]
  %v94 = vld [vmem:[%s1 + $0x40] sm:$0xff]
  %v95 = vld [vmem:[%s1 + $0x48] sm:$0xff]
  %v96 = vld [vmem:[%s1 + $0x50] sm:$0xff]
  %v97 = vld [vmem:[%s1 + $0x58] sm:$0xff]
  %v98 = vld [vmem:[%s1 + $0x60] sm:$0xff]
  %v99 = vld [vmem:[%s1 + $0x68] sm:$0xff]
  %v100 = vld [vmem:[%s1 + $0x70] sm:$0xff]
  %v101 = vld [vmem:[%s1 + $0x78] sm:$0xff]
  %v102 = vld [vmem:[%s1 + $0x80] sm:$0xff]
  %v103 = vld [vmem:[%s1 + $0x88] sm:$0xff]
  %v104 = vld [vmem:[%s1 + $0x90] sm:$0xff]
  %v105 = vld [vmem:[%s1 + $0x98] sm:$0xff]
  %v106 = vld [vmem:[%s1 + $0xa0] sm:$0xff]
  %v107 = vld [vmem:[%s1 + $0xa8] sm:$0xff]
  %v108 = vld [vmem:[%s1 + $0xb0] sm:$0xff]
  %v109 = vld [vmem:[%s1 + $0xb8] sm:$0xff]
  %v110 = vld [vmem:[%s2] sm:$0x1]
  %v112 = vlaneseq
  %v113 = vshrl.u32 %v112, 7
  %v114 = vsub.s32 0, %v113
  %v115 = vrot.slane %v110, %v114
  %v118 = vsel %vm63, %v79, 0
  %v121 = vsel %vm63, %v81, 0
  %v124 = vsel %vm63, %v83, 0
  %v127 = vsel %vm63, %v85, 0
  %129 = vmatprep.subr.mxu0 0.0
  %130 = vmatpush1.msra.mxu0 %v101
  %131 = vmatprep.subr.mxu0 0.0
  %132 = vmatpush1.msra.mxu0 %v100
  %133 = vmatprep.subr.mxu0 0.0
  %134 = vmatpush1.msra.mxu0 %v99
  %135 = vmatprep.subr.mxu0 0.0
  %136 = vmatpush1.msra.mxu0 %v98
  %137 = vmatprep.subr.mxu0 0.0
  %138 = vmatpush1.msra.mxu0 %v97
  %139 = vmatprep.subr.mxu0 0.0
  %140 = vmatpush1.msra.mxu0 %v96
  %141 = vmatprep.subr.mxu0 0.0
  %142 = vmatpush1.msra.mxu0 %v95
  %143 = vmatprep.subr.mxu0 0.0
  %144 = vmatpush1.msra.mxu0 %v94
  %145 = vmatprep.subr.mxu0 0.0
  %146 = vmatpush1.msra.mxu0 %v93
  %147 = vmatprep.subr.mxu0 0.0
  %148 = vmatpush1.msra.mxu0 %v92
  %149 = vmatprep.subr.mxu0 0.0
  %150 = vmatpush1.msra.mxu0 %v91
  %151 = vmatprep.subr.mxu0 0.0
  %152 = vmatpush1.msra.mxu0 %v90
  %153 = vmatprep.subr.mxu0 0.0
  %154 = vmatpush1.msra.mxu0 %v89
  %155 = vmatprep.subr.mxu0 0.0
  %156 = vmatpush1.msra.mxu0 %v88
  %157 = vmatprep.subr.mxu0 0.0
  %158 = vmatpush1.msra.mxu0 %v87
  %159 = vmatprep.subr.mxu0 0.0
  %160 = vmatpush1.msra.mxu0 %v86
  %161 = vmatprep.subr.mxu0 0.0
  %162 = vmatpush2.msra.mxu0 0.0
  %163 = vmatprep.subr.mxu0 0.0
  %164 = vmatpush2.msra.mxu0 0.0
  %165 = vmatprep.subr.mxu0 0.0
  %166 = vmatpush2.msra.mxu0 0.0
  %167 = vmatprep.subr.mxu0 0.0
  %168 = vmatpush2.msra.mxu0 0.0
  %169 = vmatprep.subr.mxu0 0.0
  %170 = vmatpush2.msra.mxu0 0.0
  %171 = vmatprep.subr.mxu0 0.0
  %172 = vmatpush2.msra.mxu0 0.0
  %173 = vmatprep.subr.mxu0 0.0
  %174 = vmatpush2.msra.mxu0 0.0
  %175 = vmatprep.subr.mxu0 0.0
  %176 = vmatpush2.msra.mxu0 0.0
  %177 = vmatprep.subr.mxu0 0.0
  %178 = vmatpush2.msra.mxu0 %v109
  %179 = vmatprep.subr.mxu0 0.0
  %180 = vmatpush2.msra.mxu0 %v108
  %181 = vmatprep.subr.mxu0 0.0
  %182 = vmatpush2.msra.mxu0 %v107
  %183 = vmatprep.subr.mxu0 0.0
  %184 = vmatpush2.msra.mxu0 %v106
  %185 = vmatprep.subr.mxu0 0.0
  %186 = vmatpush2.msra.mxu0 %v105
  %187 = vmatprep.subr.mxu0 0.0
  %188 = vmatpush2.msra.mxu0 %v104
  %189 = vmatprep.subr.mxu0 0.0
  %190 = vmatpush2.msra.mxu0 %v103
  %191 = vmatprep.subr.mxu0 0.0
  %192 = vmatpush2.msra.mxu0 %v102
  %193 = vmatprep.mubr.f32.mxu0 %v118
  %194 = vmatmul.mubr.f32.gmra.mxu0 %v78
  %v195 = vpop.f32.mrf.mxu0
  %v196 = vadd.f32 %v115, %v195
  %v197 = vpop.f32.mrf.mxu0
  %198 = vmatprep.mubr.f32.mxu0 %v121
  %199 = vmatmul.mubr.f32.gmra.mxu0 %v80
  %v200 = vpop.f32.mrf.mxu0
  %v201 = vadd.f32 %v115, %v200
  %v202 = vpop.f32.mrf.mxu0
  %203 = vmatprep.mubr.f32.mxu0 %v124
  %204 = vmatmul.mubr.f32.gmra.mxu0 %v82
  %v205 = vpop.f32.mrf.mxu0
  %v206 = vadd.f32 %v115, %v205
  %v207 = vpop.f32.mrf.mxu0
  %208 = vmatprep.mubr.f32.mxu0 %v127
  %209 = vmatmul.mubr.f32.gmra.mxu0 %v84
  %v210 = vpop.f32.mrf.mxu0
  %v211 = vadd.f32 %v115, %v210
  %v212 = vpop.f32.mrf.mxu0
  %213 = vdwg.mxu0
  %214 = vst [vmem:[%s3] sm:$0xff] %v196
  %215 = vst [vmem:[%s3 + $0x8] sm:$0xff] %v201
  %216 = vst [vmem:[%s3 + $0x10] sm:$0xff] %v206
  %217 = vst [vmem:[%s3 + $0x18] sm:$0xff] %v211
  // Predicated region
  $region14: #{partial_forward.1} parent=0 // pred_check
    _
  $region15: #{partial_forward.1} parent=0 // pred_check_branch
    %219 = sbr.rel (0) target = $region17
  $region16: #{partial_forward.1} parent=0 // pred_region
    _
  $region17: #{partial_forward.1} parent=0 // pred_fallthru
    _
  // Predicated region
  $region18: #{partial_forward.1} parent=0 // pred_check
    _
  $region19: #{partial_forward.1} parent=0 // pred_check_branch
    %221 = sbr.rel (0) target = $region21
  $region20: #{partial_forward.1} parent=0 // pred_region
    _
  $region21: #{partial_forward.1} parent=0 // pred_fallthru
    _

</llo_original>
